<compile_context>
chip_gen: v7x
topology: tpu7x:2x2x1
jax: 0.10.0
libtpu: 0.0.40
codegen_flags: <defaults>
</compile_context>

<pallas_src>
import jax
import jax.numpy as jnp
from jax.experimental import pallas as pl
from jax.experimental.pallas import tpu as pltpu


def _round_up(n, m):
    return ((n + m - 1) // m) * m


def _mish(x):
    # mish(x) = x * tanh(softplus(x)).  With e = exp(x):
    #   tanh(softplus(x)) = ((1+e)^2 - 1) / ((1+e)^2 + 1) = (e^2 + 2e) / (e^2 + 2e + 2)
    # For x > 20, softplus(x) ~= x and tanh(x) == 1 in f32, so mish(x) ~= x; clamp
    # exp's argument so the dead branch never overflows.
    e = jnp.exp(jnp.minimum(x, 20.0))
    num = e * (e + 2.0)
    y = x * num * pl.reciprocal(num + 2.0, approx=True)
    return jnp.where(x > 20.0, x, y)


# ----------------------------- kernels ---------------------------------------


def mishff_kernel_single(x_ref, wi_ref, wo_ref, o_ref):
    # d_ff fits a single tile: no accumulator, write the output directly.
    h = jnp.dot(x_ref[...], wi_ref[...], preferred_element_type=jnp.float32)
    h = _mish(h).astype(wo_ref.dtype)
    o_ref[...] = jnp.dot(h, wo_ref[...],
                         preferred_element_type=jnp.float32).astype(o_ref.dtype)


def mishff_kernel_multi(x_ref, wi_ref, wo_ref, o_ref, acc_ref):
    # Reduction over d_ff tiles (grid axis 1 has >= 2 steps).
    k = pl.program_id(1)
    last = pl.num_programs(1) - 1

    h = jnp.dot(x_ref[...], wi_ref[...], preferred_element_type=jnp.float32)
    h = _mish(h).astype(wo_ref.dtype)
    partial = jnp.dot(h, wo_ref[...], preferred_element_type=jnp.float32)

    @pl.when(k == 0)
    def _():
        acc_ref[...] = partial          # first step: no separate zero-init pass

    @pl.when(jnp.logical_and(k > 0, k < last))
    def _():
        acc_ref[...] += partial

    @pl.when(k == last)                 # last >= 1 here, never overlaps k == 0
    def _():
        # Fused final accumulate + store: saves one acc load/store round-trip.
        o_ref[...] = (acc_ref[...] + partial).astype(o_ref.dtype)


# ----------------------------- tiling helpers ---------------------------------


def _pick_ff_tiling(d_ff, tff_max):
    """Return (d_ff_padded, tff): tff multiple of 128, divides d_ff_padded."""
    tff_max = max(128, (tff_max // 128) * 128)
    d128 = _round_up(d_ff, 128)
    if d128 <= tff_max:
        return d128, d128
    # Prefer the largest multiple-of-128 divisor of the 128-rounded d_ff ...
    t = (min(tff_max, d128) // 128) * 128
    while d128 % t:
        t -= 128
    if t >= 256:
        return d128, t
    # ... but for awkward d_ff (divisor degrades to 128) pad up to a multiple of
    # tff_max instead of multiplying reduction steps (padded cols are inert:
    # h = 0, mish(0) = 0, and the wo pad rows are zero).
    return _round_up(d_ff, tff_max), tff_max


def _vmem_tile_bytes(tm, tff, d_model_p, in_isz, out_isz):
    x_t = tm * d_model_p * in_isz
    wi_t = d_model_p * tff * in_isz
    wo_t = tff * d_model_p * in_isz
    out_t = tm * d_model_p * out_isz
    acc_t = tm * d_model_p * 4
    # BlockSpec double-buffers every streamed operand; acc scratch is single.
    return 2 * (x_t + wi_t + wo_t + out_t) + acc_t


def _vmem_budget_bytes():
    # Generation-aware budget: ~half of physical VMEM (v5e/v6e: 128 MiB -> 64 MiB,
    # v7x: 64 MiB -> 32 MiB).  Conservative fallback if the query is unavailable.
    try:
        cap = pltpu.get_tpu_info().vmem_capacity_bytes
    except Exception:
        cap = 64 * 1024 * 1024
    return int(min(cap // 2, 64 * 1024 * 1024))


# ----------------------------- wrapper -----------------------------------------


def make_mishff(wi, wo, *, tm_max=512, tff_max=512, compute_dtype=jnp.bfloat16):
    """Prepare weights once (cast to the MXU dtype + pad lane-dense) and return apply(x).

    wi: [d_model, d_ff]  (== torch wi.weight.T);  wo: [d_ff, d_model] (== torch wo.weight.T).
    """
    d_model, d_ff = wi.shape
    assert wo.shape == (d_ff, d_model)

    d_model_p = _round_up(d_model, 128)
    d_ff_p, tff = _pick_ff_tiling(d_ff, tff_max)

    vmem_budget = _vmem_budget_bytes()
    in_isz = jnp.dtype(compute_dtype).itemsize
    row_align = max(8, 32 // in_isz)            # bf16 sublane packing -> 16 rows
    tm_r = max(row_align, _round_up(tm_max, row_align))

    # If the worst-case (tm = tm_max) tile set would blow the per-generation VMEM
    # budget (large d_model on v7x), shrink the d_ff tile before padding weights.
    while tff > 128 and _vmem_tile_bytes(tm_r, tff, d_model_p, in_isz, 4) > vmem_budget:
        tff = max(128, ((tff // 2) // 128) * 128)
        d_ff_p = _round_up(d_ff, tff)

    # One-time weight prep (hoisted out of the per-call path).
    wip = wi.astype(compute_dtype)
    wop = wo.astype(compute_dtype)
    if wip.shape != (d_model_p, d_ff_p):
        wip = jnp.pad(wip, ((0, d_model_p - d_model), (0, d_ff_p - d_ff)))
    if wop.shape != (d_ff_p, d_model_p):
        wop = jnp.pad(wop, ((0, d_ff_p - d_ff), (0, d_model_p - d_model)))

    grid_k = d_ff_p // tff

    def apply(x):
        assert x.shape[-1] == d_model
        lead = x.shape[:-1]
        out_dtype = x.dtype
        out_isz = jnp.dtype(out_dtype).itemsize

        x2 = x.reshape(-1, d_model)
        M = x2.shape[0]
        M8 = _round_up(max(M, 1), row_align)

        tm = min(tm_r, M8)
        # Guarantee >= 2 row tiles on the "parallel" axis when enough rows exist
        # so both v7x TensorCores (and megacore scheduling) get work.
        if M8 >= 256:
            tm = min(tm, _round_up((M8 + 1) // 2, row_align))
        # Final VMEM guard: shrink the row tile if the tile set exceeds the budget.
        while tm > row_align and _vmem_tile_bytes(tm, tff, d_model_p, in_isz,
                                                  out_isz) > vmem_budget:
            tm = max(row_align, _round_up(tm // 2, row_align))

        M_p = _round_up(M, tm)
        grid = (M_p // tm, grid_k)

        x2p = x2.astype(compute_dtype)
        if x2p.shape != (M_p, d_model_p):
            x2p = jnp.pad(x2p, ((0, M_p - M), (0, d_model_p - d_model)))

        if grid_k == 1:
            kernel = mishff_kernel_single
            scratch = []
        else:
            kernel = mishff_kernel_multi
            scratch = [pltpu.VMEM((tm, d_model_p), jnp.float32)]

        out = pl.pallas_call(
            kernel,
            out_shape=jax.ShapeDtypeStruct((M_p, d_model_p), out_dtype),
            grid_spec=pltpu.PrefetchScalarGridSpec(
                num_scalar_prefetch=0,
                grid=grid,
                in_specs=[
                    pl.BlockSpec((tm, d_model_p), lambda i, k: (i, 0)),   # x tile, held over k
                    pl.BlockSpec((d_model_p, tff), lambda i, k: (0, k)),  # wi tile, streams
                    pl.BlockSpec((tff, d_model_p), lambda i, k: (k, 0)),  # wo tile, streams
                ],
                out_specs=pl.BlockSpec((tm, d_model_p), lambda i, k: (i, 0)),
                scratch_shapes=scratch,
            ),
            compiler_params=pltpu.CompilerParams(
                dimension_semantics=("parallel", "arbitrary"),
                vmem_limit_bytes=vmem_budget,
            ),
        )(x2p, wip, wop)

        return out[:M, :d_model].reshape(*lead, d_model)

    return apply


def mishff_pallas(x, wi, wo, **kwargs):
    """One-shot convenience wrapper (prepares weights per call)."""
    return make_mishff(wi, wo, **kwargs)(x)


def reference_mishff(x, wi, wo):
    h = jnp.dot(x, wi)
    sp = jnp.where(h > 20.0, h, jnp.log1p(jnp.exp(jnp.minimum(h, 20.0))))
    h = h * jnp.tanh(sp)
    return jnp.dot(h, wo)


if __name__ == "__main__":
    key = jax.random.PRNGKey(0)

    # Small shapes consistent with the module (d_ff ~= 4 * d_model):
    #  - case 1: lane-aligned dims, single reduction step, one row tile
    #  - case 2: unaligned dims (padding) + tff_max=128 -> 3 reduction steps
    #  - case 3: enough rows for >= 2 row tiles (exercises the megacore split)
    cases = [
        dict(batch=2, seq=8, d_model=32, d_ff=128, tff_max=512),
        dict(batch=2, seq=5, d_model=48, d_ff=300, tff_max=128),
        dict(batch=6, seq=50, d_model=64, d_ff=256, tff_max=512),
    ]
    for c in cases:
        key, kx, kwi, kwo = jax.random.split(key, 4)
        x = jax.random.normal(kx, (c["batch"], c["seq"], c["d_model"]), dtype=jnp.float32)
        # Deterministic "Kaiming-uniform-like" init for the two bias-free Linear layers.
        wi = jax.random.uniform(kwi, (c["d_model"], c["d_ff"]), dtype=jnp.float32,
                                minval=-1.0, maxval=1.0) / jnp.sqrt(c["d_model"])
        wo = jax.random.uniform(kwo, (c["d_ff"], c["d_model"]), dtype=jnp.float32,
                                minval=-1.0, maxval=1.0) / jnp.sqrt(c["d_ff"])

        mishff = make_mishff(wi, wo, tff_max=c["tff_max"])   # one-time weight prep
        out = jax.block_until_ready(mishff(x))
        ref = reference_mishff(x, wi, wo)

        assert out.shape == x.shape
        assert out.dtype == x.dtype
        # bf16 MXU inputs (f32 accumulation) + approx reciprocal in mish -> ~1e-2 rel err.
        assert jnp.allclose(out, ref, atol=3e-2, rtol=3e-2), "mismatch vs JAX reference"

    print("KERNEL_OK")
</pallas_src>

<mosaic_0001>
module attributes {stable_mosaic.version = 11 : i64} {
  func.func @mishff_kernel_single(%arg0: i32, %arg1: i32, %arg2: memref<16x128xbf16, #tpu.memory_space<vmem>>, %arg3: memref<128x128xbf16, #tpu.memory_space<vmem>>, %arg4: memref<128x128xbf16, #tpu.memory_space<vmem>>, %arg5: memref<16x128xf32, #tpu.memory_space<vmem>>) attributes {dimension_semantics = [#tpu.dimension_semantics<parallel>, #tpu.dimension_semantics<arbitrary>], iteration_bounds = array<i64: 1, 1>, scalar_prefetch = 0 : i64, scratch_operands = 0 : i64, tpu.core_type = #tpu.core_type<tc>, window_params = [{transform_indices = @transform_0, window_bounds = array<i64: 16, 128>}, {transform_indices = @transform_1, window_bounds = array<i64: 128, 128>}, {transform_indices = @transform_2, window_bounds = array<i64: 128, 128>}, {transform_indices = @transform_3, window_bounds = array<i64: 16, 128>}]} {
    %c0 = arith.constant 0 : index
    %c0_0 = arith.constant 0 : index
    %0 = vector.load %arg2[%c0, %c0_0] : memref<16x128xbf16, #tpu.memory_space<vmem>>, vector<16x128xbf16>
    %c0_1 = arith.constant 0 : index
    %c0_2 = arith.constant 0 : index
    %1 = vector.load %arg3[%c0_1, %c0_2] : memref<128x128xbf16, #tpu.memory_space<vmem>>, vector<128x128xbf16>
    %cst = arith.constant dense<0.000000e+00> : vector<16x128xf32>
    %2 = tpu.matmul %0, %1, %cst {dimension_numbers = #tpu.dot_dimension_numbers<[1], [0], [0], [1], [0, 0, 1, 1], [], []>} : vector<16x128xbf16>, vector<128x128xbf16>, vector<16x128xf32> -> vector<16x128xf32>
    %cst_3 = arith.constant 2.000000e+01 : f32
    %3 = vector.broadcast %cst_3 : f32 to vector<16x128xf32>
    %4 = arith.minimumf %2, %3 : vector<16x128xf32>
    %5 = math.exp %4 : vector<16x128xf32>
    %cst_4 = arith.constant 2.000000e+00 : f32
    %6 = vector.broadcast %cst_4 : f32 to vector<16x128xf32>
    %7 = arith.addf %5, %6 : vector<16x128xf32>
    %8 = arith.mulf %5, %7 : vector<16x128xf32>
    %9 = arith.mulf %2, %8 : vector<16x128xf32>
    %cst_5 = arith.constant 2.000000e+00 : f32
    %10 = vector.broadcast %cst_5 : f32 to vector<16x128xf32>
    %11 = arith.addf %8, %10 : vector<16x128xf32>
    %12 = tpu.reciprocal %11 {approx = true} : vector<16x128xf32> -> vector<16x128xf32>
    %13 = arith.mulf %9, %12 : vector<16x128xf32>
    %cst_6 = arith.constant 2.000000e+01 : f32
    %14 = vector.broadcast %cst_6 : f32 to vector<16x128xf32>
    %15 = arith.cmpf ogt, %2, %14 : vector<16x128xf32>
    %16 = arith.select %15, %2, %13 : vector<16x128xi1>, vector<16x128xf32>
    %17 = arith.truncf %16 : vector<16x128xf32> to vector<16x128xbf16>
    %c0_7 = arith.constant 0 : index
    %c0_8 = arith.constant 0 : index
    %18 = vector.load %arg4[%c0_7, %c0_8] : memref<128x128xbf16, #tpu.memory_space<vmem>>, vector<128x128xbf16>
    %cst_9 = arith.constant dense<0.000000e+00> : vector<16x128xf32>
    %19 = tpu.matmul %17, %18, %cst_9 {dimension_numbers = #tpu.dot_dimension_numbers<[1], [0], [0], [1], [0, 0, 1, 1], [], []>} : vector<16x128xbf16>, vector<128x128xbf16>, vector<16x128xf32> -> vector<16x128xf32>
    %c0_10 = arith.constant 0 : index
    %c0_11 = arith.constant 0 : index
    %20 = vector.load %arg5[%c0_10, %c0_11] : memref<16x128xf32, #tpu.memory_space<vmem>>, vector<16x128xf32>
    tpu.vector_store %arg5[%c0_10, %c0_11], %19 {strides = array<i32>} : memref<16x128xf32, #tpu.memory_space<vmem>>, vector<16x128xf32>,
    return
  }
  func.func @transform_0(%arg0: i32, %arg1: i32) -> (i32, i32) {
    %c0_i32 = arith.constant 0 : i32
    %c0_i32_0 = arith.constant 0 : i32
    return %arg0, %c0_i32 : i32, i32
  }
  func.func @transform_1(%arg0: i32, %arg1: i32) -> (i32, i32) {
    %c0_i32 = arith.constant 0 : i32
    %c0_i32_0 = arith.constant 0 : i32
    return %c0_i32, %arg1 : i32, i32
  }
  func.func @transform_2(%arg0: i32, %arg1: i32) -> (i32, i32) {
    %c0_i32 = arith.constant 0 : i32
    %c0_i32_0 = arith.constant 0 : i32
    return %arg1, %c0_i32 : i32, i32
  }
  func.func @transform_3(%arg0: i32, %arg1: i32) -> (i32, i32) {
    %c0_i32 = arith.constant 0 : i32
    %c0_i32_0 = arith.constant 0 : i32
    return %arg0, %c0_i32 : i32, i32
  }
}

</mosaic_0001>

<llo_original>
// kernel: tpu_custom_call.1
$region0: #{tpu_custom_call.1}
  #allocation0 [shape = 'u32[]', space=smem, size = 0x4, offset = 0x4, fixed_abs, tag = 'smem constant byte address 0x4 - core index']
  #allocation1 [shape = 'u32[144,128]{1,0:T(1,128)}', space=vmem, size = 0x12000, scoped, tag = 'internal scratch']
  %s0 = inlined_call_operand.hbm [shape: bf16[16,128], index: 0, kind: input, shape index: {}]
  %s1 = inlined_call_operand.hbm [shape: bf16[128,128], index: 1, kind: input, shape index: {}]
  %s2 = inlined_call_operand.hbm [shape: bf16[128,128], index: 2, kind: input, shape index: {}]
  %s3 = inlined_call_operand.hbm [shape: f32[16,128], index: 3, kind: output, shape index: {}]
  %s4 = sld [smem:[#allocation0]]
  $region34: #{tpu_custom_call.1} parent=0
    _
  %s6 = ssub.s32 1, %s4
  %s7 = scalar_select 0, %s6, %s4
  $region1: #{tpu_custom_call.1} parent=0
    #allocation2 [shape = 'u8[4096]{0}', space=vmem, size = 0x1000, scoped, tag = 'input window, operand 0, single buffered']
    #allocation3 [shape = 's32[1]{0}', space=sflag, size = 0x4, scoped, tag = 'scoped memory for tpu_custom_call.1']
    #allocation4 [shape = 's32[1]{0}', space=sflag, size = 0x4, scoped, tag = 'scoped memory for tpu_custom_call.1']
    #allocation5 [shape = 'u8[32768]{0}', space=vmem, size = 0x8000, scoped, tag = 'input window, operand 1, single buffered']
    #allocation6 [shape = 's32[1]{0}', space=sflag, size = 0x4, scoped, tag = 'scoped memory for tpu_custom_call.1']
    #allocation7 [shape = 'u8[32768]{0}', space=vmem, size = 0x8000, scoped, tag = 'input window, operand 2, single buffered']
    #allocation8 [shape = 'u8[8192]{0}', space=vmem, size = 0x2000, scoped, tag = 'output window, operand 0, single buffered']
    %8 = vsyncpa [#allocation3], 0
    %9 = vsyncpa [#allocation6], 0
    %10 = vsyncpa [#allocation4], 0
    // Predicated region
    $region2: #{tpu_custom_call.1} parent=1 // pred_check
      _
    $region3: #{tpu_custom_call.1} parent=1 // pred_check_branch
      %12 = sbr.rel (0) target = $region5
    $region4: #{tpu_custom_call.1} parent=1 // pred_region
      %s14 = ssub.s32 128, 128
      %15 = vsyncadd [#allocation3], %s14
      %s16 = sshll.u32 [#allocation2], 4
      %s17 = int_to_ptr.vmem [resolvable:$true] %s16
      %22 = dma.hbm_to_vmem [thread:$0]  %s0, 128, %s17, [#allocation3], 64, 64, 4
    $region5: #{tpu_custom_call.1} parent=1 // pred_fallthru
      _
    // Predicated region
    $region6: #{tpu_custom_call.1} parent=1 // pred_check
      _
    $region7: #{tpu_custom_call.1} parent=1 // pred_check_branch
      %24 = sbr.rel (0) target = $region9
    $region8: #{tpu_custom_call.1} parent=1 // pred_region
      %s26 = ssub.s32 1024, 1024
      %27 = vsyncadd [#allocation6], %s26
      %s28 = sshll.u32 [#allocation5], 4
      %s29 = int_to_ptr.vmem [resolvable:$true] %s28
      %34 = dma.hbm_to_vmem [thread:$0]  %s1, 1024, %s29, [#allocation6], 64, 64, 4
    $region9: #{tpu_custom_call.1} parent=1 // pred_fallthru
      _
    // Predicated region
    $region10: #{tpu_custom_call.1} parent=1 // pred_check
      _
    $region11: #{tpu_custom_call.1} parent=1 // pred_check_branch
      %36 = sbr.rel (0) target = $region13
    $region12: #{tpu_custom_call.1} parent=1 // pred_region
      %s38 = ssub.s32 1024, 1024
      %39 = vsyncadd [#allocation6], %s38
      %s40 = sshll.u32 [#allocation7], 4
      %s41 = int_to_ptr.vmem [resolvable:$true] %s40
      %46 = dma.hbm_to_vmem [thread:$0]  %s2, 1024, %s41, [#allocation6], 64, 64, 4
    $region13: #{tpu_custom_call.1} parent=1 // pred_fallthru
      _
    // Predicated region
    $region14: #{tpu_custom_call.1} parent=1 // pred_check
      _
    $region15: #{tpu_custom_call.1} parent=1 // pred_check_branch
      %48 = sbr.rel (0) target = $region17
    $region16: #{tpu_custom_call.1} parent=1 // pred_region
      %49 = dma.done [#allocation3], 128
    $region17: #{tpu_custom_call.1} parent=1 // pred_fallthru
      _
    // Predicated region
    $region18: #{tpu_custom_call.1} parent=1 // pred_check
      _
    $region19: #{tpu_custom_call.1} parent=1 // pred_check_branch
      %51 = sbr.rel (0) target = $region21
    $region20: #{tpu_custom_call.1} parent=1 // pred_region
      %52 = dma.done [#allocation6], 1024
    $region21: #{tpu_custom_call.1} parent=1 // pred_fallthru
      _
    // Predicated region
    $region22: #{tpu_custom_call.1} parent=1 // pred_check
      _
    $region23: #{tpu_custom_call.1} parent=1 // pred_check_branch
      %54 = sbr.rel (0) target = $region25
    $region24: #{tpu_custom_call.1} parent=1 // pred_region
      %55 = dma.done [#allocation6], 1024
    $region25: #{tpu_custom_call.1} parent=1 // pred_fallthru
      _
    %v57 = vld [vmem:[#allocation2] sm:$0xf]
    %v58 = vld [vmem:[#allocation2 + $0x4] sm:$0xf]
    %v59 = vld [vmem:[#allocation5] sm:$0xf]
    %v60 = vld [vmem:[#allocation5 + $0x4] sm:$0xf]
    %v61 = vld [vmem:[#allocation5 + $0x8] sm:$0xf]
    %v62 = vld [vmem:[#allocation5 + $0xc] sm:$0xf]
    %v63 = vld [vmem:[#allocation5 + $0x10] sm:$0xf]
    %v64 = vld [vmem:[#allocation5 + $0x14] sm:$0xf]
    %v65 = vld [vmem:[#allocation5 + $0x18] sm:$0xf]
    %v66 = vld [vmem:[#allocation5 + $0x1c] sm:$0xf]
    %v67 = vld [vmem:[#allocation5 + $0x20] sm:$0xf]
    %v68 = vld [vmem:[#allocation5 + $0x24] sm:$0xf]
    %v69 = vld [vmem:[#allocation5 + $0x28] sm:$0xf]
    %v70 = vld [vmem:[#allocation5 + $0x2c] sm:$0xf]
    %v71 = vld [vmem:[#allocation5 + $0x30] sm:$0xf]
    %v72 = vld [vmem:[#allocation5 + $0x34] sm:$0xf]
    %v73 = vld [vmem:[#allocation5 + $0x38] sm:$0xf]
    %v74 = vld [vmem:[#allocation5 + $0x3c] sm:$0xf]
    %v77 = vunpack.c.l.b16 %v57
    %v78 = vunpack.c.l.b16 %v58
    %v79 = vpack.c.b16 %v78, %v77
    %v97 = vunpack.c.l.b16 %v59
    %v98 = vunpack.c.l.b16 %v60
    %v99 = vunpack.c.l.b16 %v61
    %v100 = vunpack.c.l.b16 %v62
    %v101 = vunpack.c.l.b16 %v63
    %v102 = vunpack.c.l.b16 %v64
    %v103 = vunpack.c.l.b16 %v65
    %v104 = vunpack.c.l.b16 %v66
    %v105 = vunpack.c.l.b16 %v67
    %v106 = vunpack.c.l.b16 %v68
    %v107 = vunpack.c.l.b16 %v69
    %v108 = vunpack.c.l.b16 %v70
    %v109 = vunpack.c.l.b16 %v71
    %v110 = vunpack.c.l.b16 %v72
    %v111 = vunpack.c.l.b16 %v73
    %v112 = vunpack.c.l.b16 %v74
    %v113 = vpack.c.b16 %v98, %v97
    %v114 = vpack.c.b16 %v100, %v99
    %v115 = vpack.c.b16 %v102, %v101
    %v116 = vpack.c.b16 %v104, %v103
    %v117 = vpack.c.b16 %v106, %v105
    %v118 = vpack.c.b16 %v108, %v107
    %v119 = vpack.c.b16 %v110, %v109
    %v120 = vpack.c.b16 %v112, %v111
    %129 = vmatprep.subr.bf16.mxu0 0
    %130 = vmatpush1.bf16.msra.mxu0 %v113
    %131 = vmatprep.subr.bf16.mxu0 0
    %132 = vmatpush1.bf16.msra.mxu0 %v114
    %133 = vmatprep.subr.bf16.mxu0 0
    %134 = vmatpush1.bf16.msra.mxu0 %v115
    %135 = vmatprep.subr.bf16.mxu0 0
    %136 = vmatpush1.bf16.msra.mxu0 %v116
    %137 = vmatprep.subr.bf16.mxu0 0
    %138 = vmatpush1.bf16.msra.mxu0 %v117
    %139 = vmatprep.subr.bf16.mxu0 0
    %140 = vmatpush1.bf16.msra.mxu0 %v118
    %141 = vmatprep.subr.bf16.mxu0 0
    %142 = vmatpush1.bf16.msra.mxu0 %v119
    %143 = vmatprep.subr.bf16.mxu0 0
    %144 = vmatpush1.bf16.msra.mxu0 %v120
    %145 = vmatprep.subr.bf16.mxu0 0
    %146 = vmatpush1.bf16.msra.mxu0 0
    %147 = vmatprep.subr.bf16.mxu0 0
    %148 = vmatpush1.bf16.msra.mxu0 0
    %149 = vmatprep.subr.bf16.mxu0 0
    %150 = vmatpush1.bf16.msra.mxu0 0
    %151 = vmatprep.subr.bf16.mxu0 0
    %152 = vmatpush1.bf16.msra.mxu0 0
    %153 = vmatprep.subr.bf16.mxu0 0
    %154 = vmatpush1.bf16.msra.mxu0 0
    %155 = vmatprep.subr.bf16.mxu0 0
    %156 = vmatpush1.bf16.msra.mxu0 0
    %157 = vmatprep.subr.bf16.mxu0 0
    %158 = vmatpush1.bf16.msra.mxu0 0
    %159 = vmatprep.subr.bf16.mxu0 0
    %160 = vmatpush1.bf16.msra.mxu0 0
    %161 = vmatprep.mubr.bf16.mxu0 0
    %162 = vmatmul.mubr.bf16.gmra.mrb[0].mxu0 %v79
    %v163 = vpop.f32.mrb[0].mxu0
    %v164 = vadd.f32 0.0, %v163
    %v165 = vpop.f32.mrb[0].mxu0
    %v166 = vpop.f32.mrb[0].mxu0
    %v167 = vadd.f32 0.0, %v166
    %v168 = vpop.f32.mrb[0].mxu0
    %169 = vdwg.mxu0
    %v170 = vmin.f32 %v164, 20.0
    %v171 = vmin.f32 %v167, 20.0
    %v172 = vmul.f32 %v170, 1.442695
    %v173 = vpow.pop %v172
    %v174 = vmul.f32 %v171, 1.442695
    %v175 = vpow.pop %v174
    %v176 = vadd.f32 %v173, 2.0
    %v177 = vadd.f32 %v175, 2.0
    %v178 = vmul.f32 %v173, %v176
    %v179 = vmul.f32 %v175, %v177
    %v180 = vmul.f32 %v164, %v178
    %v181 = vmul.f32 %v167, %v179
    %v182 = vadd.f32 %v178, 2.0
    %v183 = vadd.f32 %v179, 2.0
    %v184 = vrcp.pop %v182
    %v185 = vrcp.pop %v183
    %v186 = vmul.f32 %v180, %v184
    %v187 = vmul.f32 %v181, %v185
    %vm188 = vcmp.gt.f32.partialorder %v164, 20.0
    %vm189 = vcmp.gt.f32.partialorder %v167, 20.0
    %v190 = vsel %vm188, %v164, %v186
    %v191 = vsel %vm189, %v167, %v187
    %v192 = vpack.c.bf16 %v191, %v190
    %v193 = vld [vmem:[#allocation7] sm:$0xf]
    %v194 = vld [vmem:[#allocation7 + $0x4] sm:$0xf]
    %v195 = vld [vmem:[#allocation7 + $0x8] sm:$0xf]
    %v196 = vld [vmem:[#allocation7 + $0xc] sm:$0xf]
    %v197 = vld [vmem:[#allocation7 + $0x10] sm:$0xf]
    %v198 = vld [vmem:[#allocation7 + $0x14] sm:$0xf]
    %v199 = vld [vmem:[#allocation7 + $0x18] sm:$0xf]
    %v200 = vld [vmem:[#allocation7 + $0x1c] sm:$0xf]
    %v201 = vld [vmem:[#allocation7 + $0x20] sm:$0xf]
    %v202 = vld [vmem:[#allocation7 + $0x24] sm:$0xf]
    %v203 = vld [vmem:[#allocation7 + $0x28] sm:$0xf]
    %v204 = vld [vmem:[#allocation7 + $0x2c] sm:$0xf]
    %v205 = vld [vmem:[#allocation7 + $0x30] sm:$0xf]
    %v206 = vld [vmem:[#allocation7 + $0x34] sm:$0xf]
    %v207 = vld [vmem:[#allocation7 + $0x38] sm:$0xf]
    %v208 = vld [vmem:[#allocation7 + $0x3c] sm:$0xf]
    %v225 = vunpack.c.l.b16 %v193
    %v226 = vunpack.c.l.b16 %v194
    %v227 = vunpack.c.l.b16 %v195
    %v228 = vunpack.c.l.b16 %v196
    %v229 = vunpack.c.l.b16 %v197
    %v230 = vunpack.c.l.b16 %v198
    %v231 = vunpack.c.l.b16 %v199
    %v232 = vunpack.c.l.b16 %v200
    %v233 = vunpack.c.l.b16 %v201
    %v234 = vunpack.c.l.b16 %v202
    %v235 = vunpack.c.l.b16 %v203
    %v236 = vunpack.c.l.b16 %v204
    %v237 = vunpack.c.l.b16 %v205
    %v238 = vunpack.c.l.b16 %v206
    %v239 = vunpack.c.l.b16 %v207
    %v240 = vunpack.c.l.b16 %v208
    %v241 = vpack.c.b16 %v226, %v225
    %v242 = vpack.c.b16 %v228, %v227
    %v243 = vpack.c.b16 %v230, %v229
    %v244 = vpack.c.b16 %v232, %v231
    %v245 = vpack.c.b16 %v234, %v233
    %v246 = vpack.c.b16 %v236, %v235
    %v247 = vpack.c.b16 %v238, %v237
    %v248 = vpack.c.b16 %v240, %v239
    %257 = vmatprep.subr.bf16.mxu0 0
    %258 = vmatpush1.bf16.msra.mxu0 %v241
    %259 = vmatprep.subr.bf16.mxu0 0
    %260 = vmatpush1.bf16.msra.mxu0 %v242
    %261 = vmatprep.subr.bf16.mxu0 0
    %262 = vmatpush1.bf16.msra.mxu0 %v243
    %263 = vmatprep.subr.bf16.mxu0 0
    %264 = vmatpush1.bf16.msra.mxu0 %v244
    %265 = vmatprep.subr.bf16.mxu0 0
    %266 = vmatpush1.bf16.msra.mxu0 %v245
    %267 = vmatprep.subr.bf16.mxu0 0
    %268 = vmatpush1.bf16.msra.mxu0 %v246
    %269 = vmatprep.subr.bf16.mxu0 0
    %270 = vmatpush1.bf16.msra.mxu0 %v247
    %271 = vmatprep.subr.bf16.mxu0 0
    %272 = vmatpush1.bf16.msra.mxu0 %v248
    %273 = vmatprep.subr.bf16.mxu0 0
    %274 = vmatpush1.bf16.msra.mxu0 0
    %275 = vmatprep.subr.bf16.mxu0 0
    %276 = vmatpush1.bf16.msra.mxu0 0
    %277 = vmatprep.subr.bf16.mxu0 0
    %278 = vmatpush1.bf16.msra.mxu0 0
    %279 = vmatprep.subr.bf16.mxu0 0
    %280 = vmatpush1.bf16.msra.mxu0 0
    %281 = vmatprep.subr.bf16.mxu0 0
    %282 = vmatpush1.bf16.msra.mxu0 0
    %283 = vmatprep.subr.bf16.mxu0 0
    %284 = vmatpush1.bf16.msra.mxu0 0
    %285 = vmatprep.subr.bf16.mxu0 0
    %286 = vmatpush1.bf16.msra.mxu0 0
    %287 = vmatprep.subr.bf16.mxu0 0
    %288 = vmatpush1.bf16.msra.mxu0 0
    %289 = vmatprep.mubr.bf16.mxu0 0
    %290 = vmatmul.mubr.bf16.gmra.mrb[0].mxu0 %v192
    %v291 = vpop.f32.mrb[0].mxu0
    %v292 = vadd.f32 0.0, %v291
    %v293 = vpop.f32.mrb[0].mxu0
    %v294 = vpop.f32.mrb[0].mxu0
    %v295 = vadd.f32 0.0, %v294
    %v296 = vpop.f32.mrb[0].mxu0
    %297 = vdwg.mxu0
    %298 = vst [vmem:[#allocation8] sm:$0xff] %v292
    %299 = vst [vmem:[#allocation8 + $0x8] sm:$0xff] %v295
    // Predicated region
    $region26: #{tpu_custom_call.1} parent=1 // pred_check
      _
    $region27: #{tpu_custom_call.1} parent=1 // pred_check_branch
      %301 = sbr.rel (0) target = $region29
    $region28: #{tpu_custom_call.1} parent=1 // pred_region
      %s303 = ssub.s32 256, 256
      %304 = vsyncadd [#allocation4], %s303
      %s305 = sshll.u32 [#allocation8], 4
      %s306 = int_to_ptr.vmem [resolvable:$true] %s305
      %311 = dma.vmem_to_hbm [thread:$0]  %s306, 256, %s3, [#allocation4], 128, 128, 8
    $region29: #{tpu_custom_call.1} parent=1 // pred_fallthru
      _
    // Predicated region
    $region30: #{tpu_custom_call.1} parent=1 // pred_check
      _
    $region31: #{tpu_custom_call.1} parent=1 // pred_check_branch
      %313 = sbr.rel (0) target = $region33
    $region32: #{tpu_custom_call.1} parent=1 // pred_region
      %314 = dma.done [#allocation4], 256
    $region33: #{tpu_custom_call.1} parent=1 // pred_fallthru
      _
    %315 = vsyncpa [#allocation3], 1
    %316 = vsyncpa [#allocation6], 1
    %317 = vsyncpa [#allocation4], 1

</llo_original>
